<compile_context>
chip_gen: v7x
topology: tpu7x:2x2x1
jax: 0.10.0
libtpu: 0.0.40
codegen_flags: <defaults>
</compile_context>

<pallas_src>
import functools

import jax
import jax.numpy as jnp
from jax.experimental import pallas as pl
from jax.experimental.pallas import tpu as pltpu

LAMBDA_S = 25.239600000000003
LAMBDA_R = 26094.162999999997   # unused in the simplified spatial-domain merge
BLOCK_SIZE = 8                  # self.mbSize (unused without block matching)
WHITE_LEVEL = 65535.0


# --------------------------------------------------------------------------
# per-generation VMEM sizing
# --------------------------------------------------------------------------
def _vmem_capacity_bytes():
    try:
        cap = int(pltpu.get_tpu_info().vmem_capacity_bytes)
        if cap >= (32 << 20):
            return cap
    except Exception:
        pass
    return 64 << 20        # conservative fallback (v7x physical VMEM)


_VMEM_CAP = _vmem_capacity_bytes()
TILE_BUDGET_BYTES = _VMEM_CAP // 3          # double-buffered working set/step
VMEM_LIMIT_BYTES = (_VMEM_CAP * 3) // 4     # scoped limit passed to Mosaic


def _compiler_params():
    return pltpu.CompilerParams(
        dimension_semantics=("parallel",),
        vmem_limit_bytes=VMEM_LIMIT_BYTES)


def _pick_tile_rows(n_rows, row_bytes, align, budget=TILE_BUDGET_BYTES,
                    max_rows=2048):
    """Row tile: multiple of `align`, fits the VMEM budget, and (when the
    image allows it) leaves >=2 grid steps so both v7x TensorCores work."""
    if n_rows <= align:
        return n_rows                       # full extent is always legal
    by_budget = max(align,
                    (min(max_rows, budget // max(row_bytes, 1)) // align) * align)
    by_steps = max(align, ((n_rows // 2) // align) * align)
    return min(by_budget, by_steps)


def _cast_f32(x):
    if jnp.issubdtype(x.dtype, jnp.floating):
        return x.astype(jnp.float32)
    # 16-bit raw: explicit zero-extend to i32 then convert (both standard).
    return x.astype(jnp.int32).astype(jnp.float32)


# --------------------------------------------------------------------------
# pass 1: temporal merge + AutoGamma log-sum partials
# --------------------------------------------------------------------------
def _merge_stats_kernel(burst_ref, merged_ref, logpart_ref, *,
                        lambda_s, inv_n, white_level, n_frames, n_rows):
    i = pl.program_id(0)
    tile_rows, w = merged_ref.shape

    ref = _cast_f32(burst_ref[0])

    def body(k, acc):
        d = _cast_f32(burst_ref[k]) - ref
        # Wiener-style robust temporal weight (stand-in for DFT Wiener merge).
        wt = lambda_s * pl.reciprocal(d * d + lambda_s, approx=True)
        return acc + wt * d

    acc = jax.lax.fori_loop(1, n_frames, body, jnp.zeros_like(ref), unroll=True)
    merged = jnp.clip(ref + acc * jnp.float32(inv_n), 0.0, white_level)
    merged_ref[...] = merged

    # Partial log-sum of log(V/256 + 1e-20) over the half-res Bayer RGB.
    # Quad neighbors are brought in with jnp.roll (static shift -> slices +
    # concat, XLU slack) and the reduction is masked to even/even positions,
    # so no stride-2 compaction is needed and wrap-around never contributes.
    m_r = jnp.roll(merged, shift=-1, axis=1)    # M[y, x+1]
    m_d = jnp.roll(merged, shift=-1, axis=0)    # M[y+1, x]
    m_dr = jnp.roll(m_d, shift=-1, axis=1)      # M[y+1, x+1]
    scale = jnp.float32(255.0 / 65535.0)
    r_q = merged * scale
    g_q = 0.5 * (m_r + m_d) * scale
    b_q = m_dr * scale
    v_q = jnp.maximum(jnp.maximum(r_q, g_q), b_q)
    logs = jnp.log(v_q * jnp.float32(1.0 / 256.0) + 1e-20)
    rows = jax.lax.broadcasted_iota(jnp.int32, (tile_rows, w), 0)
    cols = jax.lax.broadcasted_iota(jnp.int32, (tile_rows, w), 1)
    valid = ((rows & 1) == 0) & ((cols & 1) == 0) & (i * tile_rows + rows < n_rows)
    logpart_ref[...] = jnp.sum(jnp.where(valid, logs, 0.0), axis=1, keepdims=True)


def hdrplus_merge_stats(burst, *, lambda_s=LAMBDA_S, white_level=WHITE_LEVEL):
    n, h, w = burst.shape
    itemsize = jnp.dtype(burst.dtype).itemsize
    align = max(8, 32 // itemsize)              # (8,128) f32 / (16,128) 16-bit
    # double-buffered per-row bytes: burst block + merged + logpart
    row_bytes = 2 * (n * w * itemsize + w * 4 + 4)
    tile = _pick_tile_rows(h, row_bytes, align)
    kernel = functools.partial(
        _merge_stats_kernel, lambda_s=lambda_s, inv_n=1.0 / n,
        white_level=white_level, n_frames=n, n_rows=h)
    return pl.pallas_call(
        kernel,
        out_shape=(jax.ShapeDtypeStruct((h, w), jnp.float32),
                   jax.ShapeDtypeStruct((h, 1), jnp.float32)),
        grid=(pl.cdiv(h, tile),),
        in_specs=[pl.BlockSpec((n, tile, w), lambda i: (0, i, 0))],
        out_specs=(pl.BlockSpec((tile, w), lambda i: (i, 0)),
                   pl.BlockSpec((tile, 1), lambda i: (i, 0))),
        compiler_params=_compiler_params(),
    )(burst)


# --------------------------------------------------------------------------
# pass 2: fused RGB -> HSV -> auto-gamma(V) -> HSV -> RGB  (cv2 conventions)
# --------------------------------------------------------------------------
def _enhance_kernel(scal_ref, r_ref, g_ref, b_ref, er_ref, eg_ref, eb_ref):
    inv_yavg = scal_ref[0]       # 1 / Yavg            (hoisted to glue)
    inv_denom = scal_ref[1]      # 1 / log(1/Yavg + 1) (hoisted to glue)
    r = r_ref[...]
    g = g_ref[...]
    b = b_ref[...]
    # RGB -> HSV (cv2 float convention, H in degrees, V in 0..255 scale)
    v = jnp.maximum(jnp.maximum(r, g), b)
    mn = jnp.minimum(jnp.minimum(r, g), b)
    delta = v - mn
    inv_d = pl.reciprocal(jnp.where(delta > 0, delta, 1.0), approx=True)
    h = jnp.where(v == r, (g - b) * inv_d,
                  jnp.where(v == g, 2.0 + (b - r) * inv_d,
                            4.0 + (r - g) * inv_d)) * 60.0
    h = jnp.where(h < 0, h + 360.0, h)
    h = jnp.where(h >= 360.0, h - 360.0, h)
    h = jnp.where(delta > 0, h, 0.0)
    inv_v = pl.reciprocal(jnp.where(v > 0, v, 1.0), approx=True)
    s = jnp.where(v > 0, delta * inv_v, 0.0)
    # AutoGammaCorrection: Y = V/256, gc = log(Y/Yavg + 1) / log(1/Yavg + 1)
    y = v * jnp.float32(1.0 / 256.0)
    gc = jnp.where(y > 0, jnp.log(y * inv_yavg + 1.0) * inv_denom, 0.0)
    v2 = gc * 255.0                                       # enhanceV
    # HSV -> RGB with the gamma-corrected V
    hp = h * jnp.float32(1.0 / 60.0)
    fl = jnp.floor(hp)
    f = hp - fl
    p = v2 * (1.0 - s)
    q = v2 * (1.0 - s * f)
    t = v2 * (1.0 - s * (1.0 - f))
    m0 = fl == 0
    m1 = fl == 1
    m2 = fl == 2
    m3 = fl == 3
    m4 = fl == 4
    er_ref[...] = jnp.where(m0, v2, jnp.where(m1, q, jnp.where(
        m2 | m3, p, jnp.where(m4, t, v2))))
    eg_ref[...] = jnp.where(m0, t, jnp.where(m1 | m2, v2, jnp.where(m3, q, p)))
    eb_ref[...] = jnp.where(m0 | m1, p, jnp.where(m2, t, jnp.where(
        m3 | m4, v2, q)))


def enhance_fused(scalars, r, g, b):
    hh, wh = r.shape
    row_bytes = 2 * 6 * wh * 4          # 3 in + 3 out f32 planes, double-buffered
    tile = _pick_tile_rows(hh, row_bytes, 8)
    plane = pl.BlockSpec((tile, wh), lambda i: (i, 0))
    smem = pl.BlockSpec(memory_space=pltpu.MemorySpace.SMEM)
    return pl.pallas_call(
        _enhance_kernel,
        out_shape=(jax.ShapeDtypeStruct((hh, wh), jnp.float32),) * 3,
        grid=(pl.cdiv(hh, tile),),
        in_specs=[smem, plane, plane, plane],
        out_specs=(plane, plane, plane),
        compiler_params=_compiler_params(),
    )(scalars, r, g, b)


# --------------------------------------------------------------------------
# full forward (glue in plain JAX)
# --------------------------------------------------------------------------
def llr2v_forward(x, *, white_level=WHITE_LEVEL):
    # input[0] -> single burst of shape (burstSize, H, W); keep native dtype
    burst = x[0]
    if jnp.issubdtype(burst.dtype, jnp.floating):
        burst = burst.astype(jnp.float32)
    n, h, w = burst.shape
    assert h % 2 == 0 and w % 2 == 0, "Bayer image must have even H and W"

    # alignHdrplus + mergeHdrplus (simplified, see TODOs) + clip; the same
    # kernel emits the AutoGamma log-sum partials over the half-res V plane.
    merged, logpart = hdrplus_merge_stats(burst, white_level=white_level)

    # starlightFastISP stand-in: RGGB 2x2 Bayer extraction -> half-res RGB,
    # 16-bit -> 8-bit scaling (cfa / 65535 * 255).  Free reshape + XLA phase
    # slices on the single merged frame.
    hh, wh = h // 2, w // 2
    m4 = merged.reshape(hh, 2, wh, 2)
    scale = jnp.float32(255.0 / 65535.0)
    r = m4[:, 0, :, 0] * scale
    g = 0.5 * (m4[:, 0, :, 1] + m4[:, 1, :, 0]) * scale
    b = m4[:, 1, :, 1] * scale

    # AutoGammaCorrection scalars (geometric-mean luminance), hoisted to glue:
    #   Yavg = exp(mean(log(V/256 + 1e-20)))
    mean_log = jnp.sum(logpart) / jnp.float32(hh * wh)
    inv_yavg = jnp.exp(-mean_log)
    inv_denom = 1.0 / jnp.log1p(inv_yavg)
    scalars = jnp.stack([inv_yavg, inv_denom]).astype(jnp.float32)

    # fused RGB->HSV -> gamma-enhanced V -> HSV->RGB (no h/s/v HBM round trip)
    er, eg, eb = enhance_fused(scalars, r, g, b)

    # RGB -> BGR, channel-last (cv2 convention, matches the module's output)
    enhance_bgr = jnp.stack([eb, eg, er], axis=-1)
    return enhance_bgr, merged


if __name__ == "__main__":
    key = jax.random.PRNGKey(0)
    # x: (batch, burstSize, H, W) native 16-bit raw burst; forward uses x[0]
    x = jax.random.randint(key, (2, 4, 16, 16), 0, 65536,
                           dtype=jnp.int32).astype(jnp.uint16)

    fwd = jax.jit(llr2v_forward)
    enhance_bgr, merged = fwd(x)
    jax.block_until_ready((enhance_bgr, merged))

    # ---- plain-JAX reference of the whole simplified pipeline ----
    burst_f = x[0].astype(jnp.float32)
    d = burst_f[1:] - burst_f[:1]
    wt = LAMBDA_S / (d * d + LAMBDA_S)
    ref_merged = jnp.clip(
        burst_f[0] + jnp.sum(wt * d, axis=0) / burst_f.shape[0],
        0.0, WHITE_LEVEL)
    hh, wh = ref_merged.shape[0] // 2, ref_merged.shape[1] // 2
    qd = ref_merged.reshape(hh, 2, wh, 2)
    sc = 255.0 / 65535.0
    r_p = qd[:, 0, :, 0] * sc
    g_p = 0.5 * (qd[:, 0, :, 1] + qd[:, 1, :, 0]) * sc
    b_p = qd[:, 1, :, 1] * sc
    v_p = jnp.maximum(jnp.maximum(r_p, g_p), b_p)
    y_p = v_p / 256.0
    yavg = jnp.exp(jnp.mean(jnp.log(y_p + 1e-20)))
    gc = jnp.where(y_p > 0,
                   jnp.log(y_p / yavg + 1.0) / jnp.log(1.0 / yavg + 1.0), 0.0)
    v_new = gc * 255.0
    # HSV->RGB with only V replaced is a pure per-pixel rescale of the RGB.
    s_v = jnp.where(v_p > 0, v_new / v_p, 0.0)
    ref_bgr = jnp.stack([b_p * s_v, g_p * s_v, r_p * s_v], axis=-1)

    assert merged.shape == (16, 16) and enhance_bgr.shape == (8, 8, 3)
    assert bool(jnp.all(jnp.isfinite(enhance_bgr)))
    err_m = float(jnp.max(jnp.abs(merged - ref_merged)))
    assert jnp.allclose(merged, ref_merged, rtol=1e-4, atol=0.1), err_m
    err_e = float(jnp.max(jnp.abs(enhance_bgr - ref_bgr)))
    assert jnp.allclose(enhance_bgr, ref_bgr, rtol=0.0, atol=1.0), err_e

    print("KERNEL_OK")
</pallas_src>

<mosaic_0001>
module attributes {stable_mosaic.version = 11 : i64} {
  func.func @_merge_stats_kernel(%arg0: i32, %arg1: memref<4x16x16xi16, #tpu.memory_space<vmem>>, %arg2: memref<16x16xf32, #tpu.memory_space<vmem>>, %arg3: memref<16x1xf32, #tpu.memory_space<vmem>>) attributes {dimension_semantics = [#tpu.dimension_semantics<parallel>], iteration_bounds = array<i64: 1>, scalar_prefetch = 0 : i64, scratch_operands = 0 : i64, tpu.core_type = #tpu.core_type<tc>, window_params = [{transform_indices = @transform_0, window_bounds = array<i64: 4, 16, 16>}, {transform_indices = @transform_1, window_bounds = array<i64: 16, 16>}, {transform_indices = @transform_2, window_bounds = array<i64: 16, 1>}]} {
    %c0 = arith.constant 0 : index
    %c0_0 = arith.constant 0 : index
    %c0_1 = arith.constant 0 : index
    %0 = vector.load %arg1[%c0, %c0_0, %c0_1] : memref<4x16x16xi16, #tpu.memory_space<vmem>>, vector<1x16x16xi16>
    %1 = vector.shape_cast %0 : vector<1x16x16xi16> to vector<16x16xi16>
    %2 = arith.extui %1 : vector<16x16xi16> to vector<16x16xi32>
    %3 = arith.sitofp %2 : vector<16x16xi32> to vector<16x16xf32>
    %cst = arith.constant 0.000000e+00 : f32
    %4 = vector.broadcast %cst : f32 to vector<16x16xf32>
    %c1_i32 = arith.constant 1 : i32
    %5 = arith.index_cast %c1_i32 : i32 to index
    %c0_2 = arith.constant 0 : index
    %c0_3 = arith.constant 0 : index
    %6 = vector.load %arg1[%5, %c0_2, %c0_3] : memref<4x16x16xi16, #tpu.memory_space<vmem>>, vector<1x16x16xi16>
    %7 = vector.shape_cast %6 : vector<1x16x16xi16> to vector<16x16xi16>
    %8 = arith.extui %7 : vector<16x16xi16> to vector<16x16xi32>
    %9 = arith.sitofp %8 : vector<16x16xi32> to vector<16x16xf32>
    %10 = arith.subf %9, %3 : vector<16x16xf32>
    %11 = arith.mulf %10, %10 : vector<16x16xf32>
    %cst_4 = arith.constant 2.523960e+01 : f32
    %12 = vector.broadcast %cst_4 : f32 to vector<16x16xf32>
    %13 = arith.addf %11, %12 : vector<16x16xf32>
    %14 = tpu.reciprocal %13 {approx = true} : vector<16x16xf32> -> vector<16x16xf32>
    %cst_5 = arith.constant 2.523960e+01 : f32
    %15 = vector.broadcast %cst_5 : f32 to vector<16x16xf32>
    %16 = arith.mulf %15, %14 : vector<16x16xf32>
    %17 = arith.mulf %16, %10 : vector<16x16xf32>
    %18 = arith.addf %4, %17 : vector<16x16xf32>
    %c2_i32 = arith.constant 2 : i32
    %19 = arith.index_cast %c2_i32 : i32 to index
    %c0_6 = arith.constant 0 : index
    %c0_7 = arith.constant 0 : index
    %20 = vector.load %arg1[%19, %c0_6, %c0_7] : memref<4x16x16xi16, #tpu.memory_space<vmem>>, vector<1x16x16xi16>
    %21 = vector.shape_cast %20 : vector<1x16x16xi16> to vector<16x16xi16>
    %22 = arith.extui %21 : vector<16x16xi16> to vector<16x16xi32>
    %23 = arith.sitofp %22 : vector<16x16xi32> to vector<16x16xf32>
    %24 = arith.subf %23, %3 : vector<16x16xf32>
    %25 = arith.mulf %24, %24 : vector<16x16xf32>
    %cst_8 = arith.constant 2.523960e+01 : f32
    %26 = vector.broadcast %cst_8 : f32 to vector<16x16xf32>
    %27 = arith.addf %25, %26 : vector<16x16xf32>
    %28 = tpu.reciprocal %27 {approx = true} : vector<16x16xf32> -> vector<16x16xf32>
    %cst_9 = arith.constant 2.523960e+01 : f32
    %29 = vector.broadcast %cst_9 : f32 to vector<16x16xf32>
    %30 = arith.mulf %29, %28 : vector<16x16xf32>
    %31 = arith.mulf %30, %24 : vector<16x16xf32>
    %32 = arith.addf %18, %31 : vector<16x16xf32>
    %c3_i32 = arith.constant 3 : i32
    %33 = arith.index_cast %c3_i32 : i32 to index
    %c0_10 = arith.constant 0 : index
    %c0_11 = arith.constant 0 : index
    %34 = vector.load %arg1[%33, %c0_10, %c0_11] : memref<4x16x16xi16, #tpu.memory_space<vmem>>, vector<1x16x16xi16>
    %35 = vector.shape_cast %34 : vector<1x16x16xi16> to vector<16x16xi16>
    %36 = arith.extui %35 : vector<16x16xi16> to vector<16x16xi32>
    %37 = arith.sitofp %36 : vector<16x16xi32> to vector<16x16xf32>
    %38 = arith.subf %37, %3 : vector<16x16xf32>
    %39 = arith.mulf %38, %38 : vector<16x16xf32>
    %cst_12 = arith.constant 2.523960e+01 : f32
    %40 = vector.broadcast %cst_12 : f32 to vector<16x16xf32>
    %41 = arith.addf %39, %40 : vector<16x16xf32>
    %42 = tpu.reciprocal %41 {approx = true} : vector<16x16xf32> -> vector<16x16xf32>
    %cst_13 = arith.constant 2.523960e+01 : f32
    %43 = vector.broadcast %cst_13 : f32 to vector<16x16xf32>
    %44 = arith.mulf %43, %42 : vector<16x16xf32>
    %45 = arith.mulf %44, %38 : vector<16x16xf32>
    %46 = arith.addf %32, %45 : vector<16x16xf32>
    %c3_i32_14 = arith.constant 3 : i32
    %cst_15 = arith.constant 2.500000e-01 : f32
    %47 = vector.broadcast %cst_15 : f32 to vector<16x16xf32>
    %48 = arith.mulf %46, %47 : vector<16x16xf32>
    %49 = arith.addf %3, %48 : vector<16x16xf32>
    %cst_16 = arith.constant 0.000000e+00 : f32
    %cst_17 = arith.constant 6.553500e+04 : f32
    %50 = vector.broadcast %cst_16 : f32 to vector<16x16xf32>
    %51 = arith.maximumf %50, %49 : vector<16x16xf32>
    %52 = vector.broadcast %cst_17 : f32 to vector<16x16xf32>
    %53 = arith.minimumf %52, %51 : vector<16x16xf32>
    %c0_18 = arith.constant 0 : index
    %c0_19 = arith.constant 0 : index
    %54 = vector.load %arg2[%c0_18, %c0_19] : memref<16x16xf32, #tpu.memory_space<vmem>>, vector<16x16xf32>
    tpu.vector_store %arg2[%c0_18, %c0_19], %53 {strides = array<i32>} : memref<16x16xf32, #tpu.memory_space<vmem>>, vector<16x16xf32>,
    %55 = vector.extract_strided_slice %53 {offsets = [0, 1], sizes = [16, 15], strides = [1, 1]} : vector<16x16xf32> to vector<16x15xf32>
    %56 = vector.extract_strided_slice %53 {offsets = [0, 0], sizes = [16, 1], strides = [1, 1]} : vector<16x16xf32> to vector<16x1xf32>
    %57 = tpu.concatenate %55, %56 in 1 : vector<16x15xf32>, vector<16x1xf32> -> vector<16x16xf32>
    %58 = vector.extract_strided_slice %53 {offsets = [1, 0], sizes = [15, 16], strides = [1, 1]} : vector<16x16xf32> to vector<15x16xf32>
    %59 = vector.extract_strided_slice %53 {offsets = [0, 0], sizes = [1, 16], strides = [1, 1]} : vector<16x16xf32> to vector<1x16xf32>
    %60 = tpu.concatenate %58, %59 in 0 : vector<15x16xf32>, vector<1x16xf32> -> vector<16x16xf32>
    %61 = vector.extract_strided_slice %60 {offsets = [0, 1], sizes = [16, 15], strides = [1, 1]} : vector<16x16xf32> to vector<16x15xf32>
    %62 = vector.extract_strided_slice %60 {offsets = [0, 0], sizes = [16, 1], strides = [1, 1]} : vector<16x16xf32> to vector<16x1xf32>
    %63 = tpu.concatenate %61, %62 in 1 : vector<16x15xf32>, vector<16x1xf32> -> vector<16x16xf32>
    %cst_20 = arith.constant 0.00389105058 : f32
    %64 = vector.broadcast %cst_20 : f32 to vector<16x16xf32>
    %65 = arith.mulf %53, %64 : vector<16x16xf32>
    %66 = arith.addf %57, %60 : vector<16x16xf32>
    %cst_21 = arith.constant 5.000000e-01 : f32
    %67 = vector.broadcast %cst_21 : f32 to vector<16x16xf32>
    %68 = arith.mulf %67, %66 : vector<16x16xf32>
    %cst_22 = arith.constant 0.00389105058 : f32
    %69 = vector.broadcast %cst_22 : f32 to vector<16x16xf32>
    %70 = arith.mulf %68, %69 : vector<16x16xf32>
    %cst_23 = arith.constant 0.00389105058 : f32
    %71 = vector.broadcast %cst_23 : f32 to vector<16x16xf32>
    %72 = arith.mulf %63, %71 : vector<16x16xf32>
    %73 = arith.maximumf %65, %70 : vector<16x16xf32>
    %74 = arith.maximumf %73, %72 : vector<16x16xf32>
    %cst_24 = arith.constant 3.906250e-03 : f32
    %75 = vector.broadcast %cst_24 : f32 to vector<16x16xf32>
    %76 = arith.mulf %74, %75 : vector<16x16xf32>
    %cst_25 = arith.constant 9.99999968E-21 : f32
    %77 = vector.broadcast %cst_25 : f32 to vector<16x16xf32>
    %78 = arith.addf %76, %77 : vector<16x16xf32>
    %79 = math.log %78 : vector<16x16xf32>
    %80 = tpu.iota {dimensions = array<i32: 0>} : vector<16x16xi32>
    %81 = tpu.iota {dimensions = array<i32: 1>} : vector<16x16xi32>
    %c1_i32_26 = arith.constant 1 : i32
    %82 = vector.broadcast %c1_i32_26 : i32 to vector<16x16xi32>
    %83 = arith.andi %80, %82 : vector<16x16xi32>
    %c0_i32 = arith.constant 0 : i32
    %84 = vector.broadcast %c0_i32 : i32 to vector<16x16xi32>
    %85 = arith.cmpi eq, %83, %84 : vector<16x16xi32>
    %c1_i32_27 = arith.constant 1 : i32
    %86 = vector.broadcast %c1_i32_27 : i32 to vector<16x16xi32>
    %87 = arith.andi %81, %86 : vector<16x16xi32>
    %c0_i32_28 = arith.constant 0 : i32
    %88 = vector.broadcast %c0_i32_28 : i32 to vector<16x16xi32>
    %89 = arith.cmpi eq, %87, %88 : vector<16x16xi32>
    %90 = arith.andi %85, %89 : vector<16x16xi1>
    %c16_i32 = arith.constant 16 : i32
    %91 = arith.muli %arg0, %c16_i32 : i32
    %92 = vector.broadcast %91 : i32 to vector<16x16xi32>
    %93 = arith.addi %92, %80 : vector<16x16xi32>
    %c16_i32_29 = arith.constant 16 : i32
    %94 = vector.broadcast %c16_i32_29 : i32 to vector<16x16xi32>
    %95 = arith.cmpi slt, %93, %94 : vector<16x16xi32>
    %96 = arith.andi %90, %95 : vector<16x16xi1>
    %cst_30 = arith.constant 0.000000e+00 : f32
    %97 = vector.broadcast %cst_30 : f32 to vector<16x16xf32>
    %98 = arith.select %96, %79, %97 : vector<16x16xi1>, vector<16x16xf32>
    %cst_31 = arith.constant dense<0.000000e+00> : vector<16xf32>
    %99 = vector.multi_reduction <add>, %98, %cst_31 [1] : vector<16x16xf32> to vector<16xf32>
    %100 = vector.shape_cast %99 : vector<16xf32> to vector<16x1xf32>
    %c0_32 = arith.constant 0 : index
    %c0_33 = arith.constant 0 : index
    %101 = vector.load %arg3[%c0_32, %c0_33] : memref<16x1xf32, #tpu.memory_space<vmem>>, vector<16x1xf32>
    tpu.vector_store %arg3[%c0_32, %c0_33], %100 {strides = array<i32>} : memref<16x1xf32, #tpu.memory_space<vmem>>, vector<16x1xf32>,
    return
  }
  func.func @transform_0(%arg0: i32) -> (i32, i32, i32) {
    %c0_i32 = arith.constant 0 : i32
    %c0_i32_0 = arith.constant 0 : i32
    %c0_i32_1 = arith.constant 0 : i32
    return %c0_i32, %arg0, %c0_i32_0 : i32, i32, i32
  }
  func.func @transform_1(%arg0: i32) -> (i32, i32) {
    %c0_i32 = arith.constant 0 : i32
    %c0_i32_0 = arith.constant 0 : i32
    return %arg0, %c0_i32 : i32, i32
  }
  func.func @transform_2(%arg0: i32) -> (i32, i32) {
    %c0_i32 = arith.constant 0 : i32
    %c0_i32_0 = arith.constant 0 : i32
    return %arg0, %c0_i32 : i32, i32
  }
}

module attributes {stable_mosaic.version = 11 : i64} {
  func.func @_enhance_kernel(%arg0: i32, %arg1: memref<2xf32, #tpu.memory_space<smem>>, %arg2: memref<8x8xf32, #tpu.memory_space<vmem>>, %arg3: memref<8x8xf32, #tpu.memory_space<vmem>>, %arg4: memref<8x8xf32, #tpu.memory_space<vmem>>, %arg5: memref<8x8xf32, #tpu.memory_space<vmem>>, %arg6: memref<8x8xf32, #tpu.memory_space<vmem>>, %arg7: memref<8x8xf32, #tpu.memory_space<vmem>>) attributes {dimension_semantics = [#tpu.dimension_semantics<parallel>], iteration_bounds = array<i64: 1>, scalar_prefetch = 0 : i64, scratch_operands = 0 : i64, tpu.core_type = #tpu.core_type<tc>, window_params = [{transform_indices = @transform_0, window_bounds = array<i64: 2>}, {transform_indices = @transform_1, window_bounds = array<i64: 8, 8>}, {transform_indices = @transform_2, window_bounds = array<i64: 8, 8>}, {transform_indices = @transform_3, window_bounds = array<i64: 8, 8>}, {transform_indices = @transform_4, window_bounds = array<i64: 8, 8>}, {transform_indices = @transform_5, window_bounds = array<i64: 8, 8>}, {transform_indices = @transform_6, window_bounds = array<i64: 8, 8>}]} {
    %c0 = arith.constant 0 : index
    %0 = memref.load %arg1[%c0] : memref<2xf32, #tpu.memory_space<smem>>
    %c1 = arith.constant 1 : index
    %1 = memref.load %arg1[%c1] : memref<2xf32, #tpu.memory_space<smem>>
    %c0_0 = arith.constant 0 : index
    %c0_1 = arith.constant 0 : index
    %2 = vector.load %arg2[%c0_0, %c0_1] : memref<8x8xf32, #tpu.memory_space<vmem>>, vector<8x8xf32>
    %c0_2 = arith.constant 0 : index
    %c0_3 = arith.constant 0 : index
    %3 = vector.load %arg3[%c0_2, %c0_3] : memref<8x8xf32, #tpu.memory_space<vmem>>, vector<8x8xf32>
    %c0_4 = arith.constant 0 : index
    %c0_5 = arith.constant 0 : index
    %4 = vector.load %arg4[%c0_4, %c0_5] : memref<8x8xf32, #tpu.memory_space<vmem>>, vector<8x8xf32>
    %5 = arith.maximumf %2, %3 : vector<8x8xf32>
    %6 = arith.maximumf %5, %4 : vector<8x8xf32>
    %7 = arith.minimumf %2, %3 : vector<8x8xf32>
    %8 = arith.minimumf %7, %4 : vector<8x8xf32>
    %9 = arith.subf %6, %8 : vector<8x8xf32>
    %cst = arith.constant 0.000000e+00 : f32
    %10 = vector.broadcast %cst : f32 to vector<8x8xf32>
    %11 = arith.cmpf ogt, %9, %10 : vector<8x8xf32>
    %cst_6 = arith.constant 1.000000e+00 : f32
    %12 = vector.broadcast %cst_6 : f32 to vector<8x8xf32>
    %13 = arith.select %11, %9, %12 : vector<8x8xi1>, vector<8x8xf32>
    %14 = tpu.reciprocal %13 {approx = true} : vector<8x8xf32> -> vector<8x8xf32>
    %15 = arith.cmpf oeq, %6, %2 : vector<8x8xf32>
    %16 = arith.subf %3, %4 : vector<8x8xf32>
    %17 = arith.mulf %16, %14 : vector<8x8xf32>
    %18 = arith.cmpf oeq, %6, %3 : vector<8x8xf32>
    %19 = arith.subf %4, %2 : vector<8x8xf32>
    %20 = arith.mulf %19, %14 : vector<8x8xf32>
    %cst_7 = arith.constant 2.000000e+00 : f32
    %21 = vector.broadcast %cst_7 : f32 to vector<8x8xf32>
    %22 = arith.addf %21, %20 : vector<8x8xf32>
    %23 = arith.subf %2, %3 : vector<8x8xf32>
    %24 = arith.mulf %23, %14 : vector<8x8xf32>
    %cst_8 = arith.constant 4.000000e+00 : f32
    %25 = vector.broadcast %cst_8 : f32 to vector<8x8xf32>
    %26 = arith.addf %25, %24 : vector<8x8xf32>
    %27 = arith.select %18, %22, %26 : vector<8x8xi1>, vector<8x8xf32>
    %28 = arith.select %15, %17, %27 : vector<8x8xi1>, vector<8x8xf32>
    %cst_9 = arith.constant 6.000000e+01 : f32
    %29 = vector.broadcast %cst_9 : f32 to vector<8x8xf32>
    %30 = arith.mulf %28, %29 : vector<8x8xf32>
    %cst_10 = arith.constant 0.000000e+00 : f32
    %31 = vector.broadcast %cst_10 : f32 to vector<8x8xf32>
    %32 = arith.cmpf olt, %30, %31 : vector<8x8xf32>
    %cst_11 = arith.constant 3.600000e+02 : f32
    %33 = vector.broadcast %cst_11 : f32 to vector<8x8xf32>
    %34 = arith.addf %30, %33 : vector<8x8xf32>
    %35 = arith.select %32, %34, %30 : vector<8x8xi1>, vector<8x8xf32>
    %cst_12 = arith.constant 3.600000e+02 : f32
    %36 = vector.broadcast %cst_12 : f32 to vector<8x8xf32>
    %37 = arith.cmpf oge, %35, %36 : vector<8x8xf32>
    %cst_13 = arith.constant 3.600000e+02 : f32
    %38 = vector.broadcast %cst_13 : f32 to vector<8x8xf32>
    %39 = arith.subf %35, %38 : vector<8x8xf32>
    %40 = arith.select %37, %39, %35 : vector<8x8xi1>, vector<8x8xf32>
    %cst_14 = arith.constant 0.000000e+00 : f32
    %41 = vector.broadcast %cst_14 : f32 to vector<8x8xf32>
    %42 = arith.cmpf ogt, %9, %41 : vector<8x8xf32>
    %cst_15 = arith.constant 0.000000e+00 : f32
    %43 = vector.broadcast %cst_15 : f32 to vector<8x8xf32>
    %44 = arith.select %42, %40, %43 : vector<8x8xi1>, vector<8x8xf32>
    %cst_16 = arith.constant 0.000000e+00 : f32
    %45 = vector.broadcast %cst_16 : f32 to vector<8x8xf32>
    %46 = arith.cmpf ogt, %6, %45 : vector<8x8xf32>
    %cst_17 = arith.constant 1.000000e+00 : f32
    %47 = vector.broadcast %cst_17 : f32 to vector<8x8xf32>
    %48 = arith.select %46, %6, %47 : vector<8x8xi1>, vector<8x8xf32>
    %49 = tpu.reciprocal %48 {approx = true} : vector<8x8xf32> -> vector<8x8xf32>
    %cst_18 = arith.constant 0.000000e+00 : f32
    %50 = vector.broadcast %cst_18 : f32 to vector<8x8xf32>
    %51 = arith.cmpf ogt, %6, %50 : vector<8x8xf32>
    %52 = arith.mulf %9, %49 : vector<8x8xf32>
    %cst_19 = arith.constant 0.000000e+00 : f32
    %53 = vector.broadcast %cst_19 : f32 to vector<8x8xf32>
    %54 = arith.select %51, %52, %53 : vector<8x8xi1>, vector<8x8xf32>
    %cst_20 = arith.constant 3.906250e-03 : f32
    %55 = vector.broadcast %cst_20 : f32 to vector<8x8xf32>
    %56 = arith.mulf %6, %55 : vector<8x8xf32>
    %cst_21 = arith.constant 0.000000e+00 : f32
    %57 = vector.broadcast %cst_21 : f32 to vector<8x8xf32>
    %58 = arith.cmpf ogt, %56, %57 : vector<8x8xf32>
    %59 = vector.broadcast %0 : f32 to vector<8x8xf32>
    %60 = arith.mulf %56, %59 : vector<8x8xf32>
    %cst_22 = arith.constant 1.000000e+00 : f32
    %61 = vector.broadcast %cst_22 : f32 to vector<8x8xf32>
    %62 = arith.addf %60, %61 : vector<8x8xf32>
    %63 = math.log %62 : vector<8x8xf32>
    %64 = vector.broadcast %1 : f32 to vector<8x8xf32>
    %65 = arith.mulf %63, %64 : vector<8x8xf32>
    %cst_23 = arith.constant 0.000000e+00 : f32
    %66 = vector.broadcast %cst_23 : f32 to vector<8x8xf32>
    %67 = arith.select %58, %65, %66 : vector<8x8xi1>, vector<8x8xf32>
    %cst_24 = arith.constant 2.550000e+02 : f32
    %68 = vector.broadcast %cst_24 : f32 to vector<8x8xf32>
    %69 = arith.mulf %67, %68 : vector<8x8xf32>
    %cst_25 = arith.constant 0.0166666675 : f32
    %70 = vector.broadcast %cst_25 : f32 to vector<8x8xf32>
    %71 = arith.mulf %44, %70 : vector<8x8xf32>
    %72 = math.floor %71 : vector<8x8xf32>
    %73 = arith.subf %71, %72 : vector<8x8xf32>
    %cst_26 = arith.constant 1.000000e+00 : f32
    %74 = vector.broadcast %cst_26 : f32 to vector<8x8xf32>
    %75 = arith.subf %74, %54 : vector<8x8xf32>
    %76 = arith.mulf %69, %75 : vector<8x8xf32>
    %77 = arith.mulf %54, %73 : vector<8x8xf32>
    %cst_27 = arith.constant 1.000000e+00 : f32
    %78 = vector.broadcast %cst_27 : f32 to vector<8x8xf32>
    %79 = arith.subf %78, %77 : vector<8x8xf32>
    %80 = arith.mulf %69, %79 : vector<8x8xf32>
    %cst_28 = arith.constant 1.000000e+00 : f32
    %81 = vector.broadcast %cst_28 : f32 to vector<8x8xf32>
    %82 = arith.subf %81, %73 : vector<8x8xf32>
    %83 = arith.mulf %54, %82 : vector<8x8xf32>
    %cst_29 = arith.constant 1.000000e+00 : f32
    %84 = vector.broadcast %cst_29 : f32 to vector<8x8xf32>
    %85 = arith.subf %84, %83 : vector<8x8xf32>
    %86 = arith.mulf %69, %85 : vector<8x8xf32>
    %cst_30 = arith.constant 0.000000e+00 : f32
    %87 = vector.broadcast %cst_30 : f32 to vector<8x8xf32>
    %88 = arith.cmpf oeq, %72, %87 : vector<8x8xf32>
    %cst_31 = arith.constant 1.000000e+00 : f32
    %89 = vector.broadcast %cst_31 : f32 to vector<8x8xf32>
    %90 = arith.cmpf oeq, %72, %89 : vector<8x8xf32>
    %cst_32 = arith.constant 2.000000e+00 : f32
    %91 = vector.broadcast %cst_32 : f32 to vector<8x8xf32>
    %92 = arith.cmpf oeq, %72, %91 : vector<8x8xf32>
    %cst_33 = arith.constant 3.000000e+00 : f32
    %93 = vector.broadcast %cst_33 : f32 to vector<8x8xf32>
    %94 = arith.cmpf oeq, %72, %93 : vector<8x8xf32>
    %cst_34 = arith.constant 4.000000e+00 : f32
    %95 = vector.broadcast %cst_34 : f32 to vector<8x8xf32>
    %96 = arith.cmpf oeq, %72, %95 : vector<8x8xf32>
    %97 = arith.ori %92, %94 : vector<8x8xi1>
    %98 = arith.select %96, %86, %69 : vector<8x8xi1>, vector<8x8xf32>
    %99 = arith.select %97, %76, %98 : vector<8x8xi1>, vector<8x8xf32>
    %100 = arith.select %90, %80, %99 : vector<8x8xi1>, vector<8x8xf32>
    %101 = arith.select %88, %69, %100 : vector<8x8xi1>, vector<8x8xf32>
    %c0_35 = arith.constant 0 : index
    %c0_36 = arith.constant 0 : index
    %102 = vector.load %arg5[%c0_35, %c0_36] : memref<8x8xf32, #tpu.memory_space<vmem>>, vector<8x8xf32>
    tpu.vector_store %arg5[%c0_35, %c0_36], %101 {strides = array<i32>} : memref<8x8xf32, #tpu.memory_space<vmem>>, vector<8x8xf32>,
    %103 = arith.ori %90, %92 : vector<8x8xi1>
    %104 = arith.select %94, %80, %76 : vector<8x8xi1>, vector<8x8xf32>
    %105 = arith.select %103, %69, %104 : vector<8x8xi1>, vector<8x8xf32>
    %106 = arith.select %88, %86, %105 : vector<8x8xi1>, vector<8x8xf32>
    %c0_37 = arith.constant 0 : index
    %c0_38 = arith.constant 0 : index
    %107 = vector.load %arg6[%c0_37, %c0_38] : memref<8x8xf32, #tpu.memory_space<vmem>>, vector<8x8xf32>
    tpu.vector_store %arg6[%c0_37, %c0_38], %106 {strides = array<i32>} : memref<8x8xf32, #tpu.memory_space<vmem>>, vector<8x8xf32>,
    %108 = arith.ori %88, %90 : vector<8x8xi1>
    %109 = arith.ori %94, %96 : vector<8x8xi1>
    %110 = arith.select %109, %69, %80 : vector<8x8xi1>, vector<8x8xf32>
    %111 = arith.select %92, %86, %110 : vector<8x8xi1>, vector<8x8xf32>
    %112 = arith.select %108, %76, %111 : vector<8x8xi1>, vector<8x8xf32>
    %c0_39 = arith.constant 0 : index
    %c0_40 = arith.constant 0 : index
    %113 = vector.load %arg7[%c0_39, %c0_40] : memref<8x8xf32, #tpu.memory_space<vmem>>, vector<8x8xf32>
    tpu.vector_store %arg7[%c0_39, %c0_40], %112 {strides = array<i32>} : memref<8x8xf32, #tpu.memory_space<vmem>>, vector<8x8xf32>,
    return
  }
  func.func @transform_0(%arg0: i32) -> i32 {
    %c0_i32 = arith.constant 0 : i32
    %c0_i32_0 = arith.constant 0 : i32
    return %c0_i32 : i32
  }
  func.func @transform_1(%arg0: i32) -> (i32, i32) {
    %c0_i32 = arith.constant 0 : i32
    %c0_i32_0 = arith.constant 0 : i32
    return %arg0, %c0_i32 : i32, i32
  }
  func.func @transform_2(%arg0: i32) -> (i32, i32) {
    %c0_i32 = arith.constant 0 : i32
    %c0_i32_0 = arith.constant 0 : i32
    return %arg0, %c0_i32 : i32, i32
  }
  func.func @transform_3(%arg0: i32) -> (i32, i32) {
    %c0_i32 = arith.constant 0 : i32
    %c0_i32_0 = arith.constant 0 : i32
    return %arg0, %c0_i32 : i32, i32
  }
  func.func @transform_4(%arg0: i32) -> (i32, i32) {
    %c0_i32 = arith.constant 0 : i32
    %c0_i32_0 = arith.constant 0 : i32
    return %arg0, %c0_i32 : i32, i32
  }
  func.func @transform_5(%arg0: i32) -> (i32, i32) {
    %c0_i32 = arith.constant 0 : i32
    %c0_i32_0 = arith.constant 0 : i32
    return %arg0, %c0_i32 : i32, i32
  }
  func.func @transform_6(%arg0: i32) -> (i32, i32) {
    %c0_i32 = arith.constant 0 : i32
    %c0_i32_0 = arith.constant 0 : i32
    return %arg0, %c0_i32 : i32, i32
  }
}

</mosaic_0001>

<llo_original>
// kernel: llr2v_forward.3
$region0: #{llr2v_forward.3}
  #allocation0 [shape = 'u32[]', space=smem, size = 0x4, offset = 0x4, fixed_abs, tag = 'smem constant byte address 0x4 - core index']
  #allocation1 [shape = 'u32[144,128]{1,0:T(1,128)}', space=vmem, size = 0x12000, scoped, tag = 'internal scratch']
  %s0 = inlined_call_operand.vmem [shape: f32[2], index: 0, kind: input, shape index: {}]
  %s1 = inlined_call_operand.vmem [shape: f32[8,8], index: 1, kind: input, shape index: {}]
  %s2 = inlined_call_operand.vmem [shape: f32[8,8], index: 2, kind: input, shape index: {}]
  %s3 = inlined_call_operand.vmem [shape: f32[8,8], index: 3, kind: input, shape index: {}]
  %s4 = inlined_call_operand.vmem [shape: f32[8,8], index: 4, kind: output, shape index: {0}]
  %s5 = inlined_call_operand.vmem [shape: f32[8,8], index: 5, kind: output, shape index: {1}]
  %s6 = inlined_call_operand.vmem [shape: f32[8,8], index: 6, kind: output, shape index: {2}]
  %7 = xla_tuple %s4, %s5, %s6
  %s8 = sld [smem:[#allocation0]]
  $region46: #{llr2v_forward.3} parent=0
    _
  %s10 = ssub.s32 1, %s8
  %s11 = scalar_select 0, %s10, %s8
  $region1: #{llr2v_forward.3} parent=0
    #allocation2 [shape = 'u8[512]{0}', space=smem, size = 0x200, scoped, tag = 'input window, operand 0, single buffered']
    #allocation3 [shape = 's32[1]{0}', space=sflag, size = 0x4, scoped, tag = 'scoped memory for llr2v_forward.3']
    %12 = vsyncpa [#allocation3], 0
    // Predicated region
    $region2: #{llr2v_forward.3} parent=1 // pred_check
      _
    $region3: #{llr2v_forward.3} parent=1 // pred_check_branch
      %14 = sbr.rel (0) target = $region5
    $region4: #{llr2v_forward.3} parent=1 // pred_region
      %s16 = ssub.s32 16, 16
      %17 = vsyncadd [#allocation3], %s16
      %s19 = sshll.u32 %s0, 4
      %s20 = int_to_ptr.vmem [resolvable:$true] %s19
      %22 = dma.vmem_to_smem %s20, 16, [#allocation2], [#allocation3]
    $region5: #{llr2v_forward.3} parent=1 // pred_fallthru
      _
    // Predicated region
    $region6: #{llr2v_forward.3} parent=1 // pred_check
      _
    $region7: #{llr2v_forward.3} parent=1 // pred_check_branch
      %24 = sbr.rel (0) target = $region9
    $region8: #{llr2v_forward.3} parent=1 // pred_region
      _
    $region9: #{llr2v_forward.3} parent=1 // pred_fallthru
      _
    // Predicated region
    $region10: #{llr2v_forward.3} parent=1 // pred_check
      _
    $region11: #{llr2v_forward.3} parent=1 // pred_check_branch
      %26 = sbr.rel (0) target = $region13
    $region12: #{llr2v_forward.3} parent=1 // pred_region
      _
    $region13: #{llr2v_forward.3} parent=1 // pred_fallthru
      _
    // Predicated region
    $region14: #{llr2v_forward.3} parent=1 // pred_check
      _
    $region15: #{llr2v_forward.3} parent=1 // pred_check_branch
      %28 = sbr.rel (0) target = $region17
    $region16: #{llr2v_forward.3} parent=1 // pred_region
      _
    $region17: #{llr2v_forward.3} parent=1 // pred_fallthru
      _
    // Predicated region
    $region18: #{llr2v_forward.3} parent=1 // pred_check
      _
    $region19: #{llr2v_forward.3} parent=1 // pred_check_branch
      %30 = sbr.rel (0) target = $region21
    $region20: #{llr2v_forward.3} parent=1 // pred_region
      %31 = dma.done [#allocation3], 16
    $region21: #{llr2v_forward.3} parent=1 // pred_fallthru
      _
    %32 = sfence
    %s33 = sld [smem:[#allocation2]]
    %s34 = sld [smem:[#allocation2 + $0x1]]
    %v35 = vld [vmem:[%s1] sm:$0xff]
    %v36 = vld [vmem:[%s2] sm:$0xff]
    %v37 = vld [vmem:[%s3] sm:$0xff]
    %v38 = vmax.f32 %v35, %v36
    %v39 = vmax.f32 %v38, %v37
    %v40 = vmin.f32 %v35, %v36
    %v41 = vmin.f32 %v40, %v37
    %v42 = vsub.f32 %v39, %v41
    %vm43 = vcmp.gt.f32.partialorder %v42, 0.0
    %v44 = vsel %vm43, %v42, 1.0
    %v45 = vrcp.pop %v44
    %vm46 = vcmp.eq.f32.partialorder %v39, %v35
    %v47 = vsub.f32 %v36, %v37
    %v48 = vmul.f32 %v47, %v45
    %vm49 = vcmp.eq.f32.partialorder %v39, %v36
    %v50 = vsub.f32 %v37, %v35
    %v51 = vmul.f32 %v50, %v45
    %v52 = vadd.f32 %v51, 2.0
    %v53 = vsub.f32 %v35, %v36
    %v54 = vmul.f32 %v53, %v45
    %v55 = vadd.f32 %v54, 4.0
    %v56 = vsel %vm49, %v52, %v55
    %v57 = vsel %vm46, %v48, %v56
    %v58 = vmul.f32 %v57, 60.0
    %vm59 = vcmp.lt.f32.partialorder %v58, 0.0
    %v60 = vadd.f32 %v58, 360.0
    %v61 = vsel %vm59, %v60, %v58
    %vm62 = vcmp.ge.f32.partialorder %v61, 360.0
    %v63 = vsub.f32 %v61, 360.0
    %v64 = vsel %vm62, %v63, %v61
    %v65 = vsel %vm43, %v64, 0.0
    %vm66 = vcmp.gt.f32.partialorder %v39, 0.0
    %v67 = vsel %vm66, %v39, 1.0
    %v68 = vrcp.pop %v67
    %v69 = vmul.f32 %v42, %v68
    %v70 = vsel %vm66, %v69, 0.0
    %v71 = vmul.f32 %v39, 0.00390625
    %vm72 = vcmp.gt.f32.partialorder %v71, 0.0
    %v73 = vstv %s33
    %v74 = vmul.f32 %v71, %v73
    %v75 = vadd.f32 %v74, 1.0
    %v76 = vlog2.pop %v75
    %v77 = vmul.f32 %v76, 0.6931472
    %v78 = vstv %s34
    %v79 = vmul.f32 %v77, %v78
    %v80 = vsel %vm72, %v79, 0.0
    %v81 = vmul.f32 %v80, 255.0
    %v82 = vmul.f32 %v65, 0.016666668
    %v83 = vfloor.f32 %v82
    %v84 = vsub.f32 %v82, %v83
    %v85 = vsub.f32 1.0, %v70
    %v86 = vmul.f32 %v81, %v85
    %v87 = vmul.f32 %v70, %v84
    %v88 = vsub.f32 1.0, %v87
    %v89 = vmul.f32 %v81, %v88
    %v90 = vsub.f32 1.0, %v84
    %v91 = vmul.f32 %v70, %v90
    %v92 = vsub.f32 1.0, %v91
    %v93 = vmul.f32 %v81, %v92
    %vm94 = vcmp.eq.f32.partialorder %v83, 0.0
    %vm95 = vcmp.eq.f32.partialorder %v83, 1.0
    %vm96 = vcmp.eq.f32.partialorder %v83, 2.0
    %vm97 = vcmp.eq.f32.partialorder %v83, 3.0
    %vm98 = vcmp.eq.f32.partialorder %v83, 4.0
    %vm99 = vmor %vm96, %vm97
    %v100 = vsel %vm98, %v93, %v81
    %v101 = vsel %vm99, %v86, %v100
    %v102 = vsel %vm95, %v89, %v101
    %v103 = vsel %vm94, %v81, %v102
    %vm104 = vcmask 64512
    %105 = vst.msk [vmem:[%s4] sm:$0xff] %vm104, %v103
    %vm106 = vmor %vm95, %vm96
    %v107 = vsel %vm97, %v89, %v86
    %v108 = vsel %vm106, %v81, %v107
    %v109 = vsel %vm94, %v93, %v108
    %110 = vst.msk [vmem:[%s5] sm:$0xff] %vm104, %v109
    %vm111 = vmor %vm94, %vm95
    %vm112 = vmor %vm97, %vm98
    %v113 = vsel %vm112, %v81, %v89
    %v114 = vsel %vm96, %v93, %v113
    %v115 = vsel %vm111, %v86, %v114
    %116 = vst.msk [vmem:[%s6] sm:$0xff] %vm104, %v115
    // Predicated region
    $region22: #{llr2v_forward.3} parent=1 // pred_check
      _
    $region23: #{llr2v_forward.3} parent=1 // pred_check_branch
      %118 = sbr.rel (0) target = $region25
    $region24: #{llr2v_forward.3} parent=1 // pred_region
      _
    $region25: #{llr2v_forward.3} parent=1 // pred_fallthru
      _
    // Predicated region
    $region26: #{llr2v_forward.3} parent=1 // pred_check
      _
    $region27: #{llr2v_forward.3} parent=1 // pred_check_branch
      %120 = sbr.rel (0) target = $region29
    $region28: #{llr2v_forward.3} parent=1 // pred_region
      _
    $region29: #{llr2v_forward.3} parent=1 // pred_fallthru
      _
    // Predicated region
    $region30: #{llr2v_forward.3} parent=1 // pred_check
      _
    $region31: #{llr2v_forward.3} parent=1 // pred_check_branch
      %122 = sbr.rel (0) target = $region33
    $region32: #{llr2v_forward.3} parent=1 // pred_region
      _
    $region33: #{llr2v_forward.3} parent=1 // pred_fallthru
      _
    // Predicated region
    $region34: #{llr2v_forward.3} parent=1 // pred_check
      _
    $region35: #{llr2v_forward.3} parent=1 // pred_check_branch
      %124 = sbr.rel (0) target = $region37
    $region36: #{llr2v_forward.3} parent=1 // pred_region
      _
    $region37: #{llr2v_forward.3} parent=1 // pred_fallthru
      _
    // Predicated region
    $region38: #{llr2v_forward.3} parent=1 // pred_check
      _
    $region39: #{llr2v_forward.3} parent=1 // pred_check_branch
      %126 = sbr.rel (0) target = $region41
    $region40: #{llr2v_forward.3} parent=1 // pred_region
      _
    $region41: #{llr2v_forward.3} parent=1 // pred_fallthru
      _
    // Predicated region
    $region42: #{llr2v_forward.3} parent=1 // pred_check
      _
    $region43: #{llr2v_forward.3} parent=1 // pred_check_branch
      %128 = sbr.rel (0) target = $region45
    $region44: #{llr2v_forward.3} parent=1 // pred_region
      _
    $region45: #{llr2v_forward.3} parent=1 // pred_fallthru
      _
    %129 = vsyncpa [#allocation3], 1

// kernel: llr2v_forward.2
$region0: #{llr2v_forward.2}
  #allocation0 [shape = 'u32[]', space=smem, size = 0x4, offset = 0x4, fixed_abs, tag = 'smem constant byte address 0x4 - core index']
  #allocation1 [shape = 'u32[144,128]{1,0:T(1,128)}', space=vmem, size = 0x12000, scoped, tag = 'internal scratch']
  %s0 = inlined_call_operand.vmem [shape: u16[4,16,16], index: 0, kind: input, shape index: {}]
  %s1 = inlined_call_operand.vmem [shape: f32[16,16], index: 1, kind: output, shape index: {0}]
  %s2 = inlined_call_operand.vmem [shape: f32[16,1], index: 2, kind: output, shape index: {1}]
  %3 = xla_tuple %s1, %s2
  %s4 = sld [smem:[#allocation0]]
  $region22: #{llr2v_forward.2} parent=0
    _
  %s6 = ssub.s32 1, %s4
  %s7 = scalar_select 0, %s6, %s4
  // Predicated region
  $region2: #{llr2v_forward.2} parent=0 // pred_check
    _
  $region3: #{llr2v_forward.2} parent=0 // pred_check_branch
    %9 = sbr.rel (0) target = $region5
  $region4: #{llr2v_forward.2} parent=0 // pred_region
    _
  $region5: #{llr2v_forward.2} parent=0 // pred_fallthru
    _
  %v10 = vld [vmem:[%s0] sm:$0xf]
  %v11 = vld [vmem:[%s0 + $0x4] sm:$0xf]
  %v12 = vunpack.c.l.b16 %v10
  %v13 = vunpack.c.l.b16 %v11
  %v14 = vand.u32 %v12, 65535
  %v15 = vand.u32 %v13, 65535
  %v16 = vcvt.s32.f32 %v14
  %v17 = vcvt.s32.f32 %v15
  %s18 = scalar_lea.vmem %s0, 8
  %v19 = vld [vmem:[%s18] sm:$0xf]
  %v20 = vld [vmem:[%s18 + $0x4] sm:$0xf]
  %v21 = vunpack.c.l.b16 %v19
  %v22 = vunpack.c.l.b16 %v20
  %v23 = vand.u32 %v21, 65535
  %v24 = vand.u32 %v22, 65535
  %v25 = vcvt.s32.f32 %v23
  %v26 = vcvt.s32.f32 %v24
  %v27 = vsub.f32 %v25, %v16
  %v28 = vsub.f32 %v26, %v17
  %v29 = vmul.f32 %v27, %v27
  %v30 = vmul.f32 %v28, %v28
  %v31 = vadd.f32 %v29, 25.2396
  %v32 = vadd.f32 %v30, 25.2396
  %v33 = vrcp.pop %v31
  %v34 = vrcp.pop %v32
  %v35 = vmul.f32 %v33, 25.2396
  %v36 = vmul.f32 %v34, 25.2396
  %v37 = vmul.f32 %v35, %v27
  %v38 = vmul.f32 %v36, %v28
  %v39 = vadd.f32 %v37, 0.0
  %v40 = vadd.f32 %v38, 0.0
  %s41 = scalar_lea.vmem %s0, 16
  %v42 = vld [vmem:[%s41] sm:$0xf]
  %v43 = vld [vmem:[%s41 + $0x4] sm:$0xf]
  %v44 = vunpack.c.l.b16 %v42
  %v45 = vunpack.c.l.b16 %v43
  %v46 = vand.u32 %v44, 65535
  %v47 = vand.u32 %v45, 65535
  %v48 = vcvt.s32.f32 %v46
  %v49 = vcvt.s32.f32 %v47
  %v50 = vsub.f32 %v48, %v16
  %v51 = vsub.f32 %v49, %v17
  %v52 = vmul.f32 %v50, %v50
  %v53 = vmul.f32 %v51, %v51
  %v54 = vadd.f32 %v52, 25.2396
  %v55 = vadd.f32 %v53, 25.2396
  %v56 = vrcp.pop %v54
  %v57 = vrcp.pop %v55
  %v58 = vmul.f32 %v56, 25.2396
  %v59 = vmul.f32 %v57, 25.2396
  %v60 = vmul.f32 %v58, %v50
  %v61 = vmul.f32 %v59, %v51
  %v62 = vadd.f32 %v39, %v60
  %v63 = vadd.f32 %v40, %v61
  %s64 = scalar_lea.vmem %s0, 24
  %v65 = vld [vmem:[%s64] sm:$0xf]
  %v66 = vld [vmem:[%s64 + $0x4] sm:$0xf]
  %v67 = vunpack.c.l.b16 %v65
  %v68 = vunpack.c.l.b16 %v66
  %v69 = vand.u32 %v67, 65535
  %v70 = vand.u32 %v68, 65535
  %v71 = vcvt.s32.f32 %v69
  %v72 = vcvt.s32.f32 %v70
  %v73 = vsub.f32 %v71, %v16
  %v74 = vsub.f32 %v72, %v17
  %v75 = vmul.f32 %v73, %v73
  %v76 = vmul.f32 %v74, %v74
  %v77 = vadd.f32 %v75, 25.2396
  %v78 = vadd.f32 %v76, 25.2396
  %v79 = vrcp.pop %v77
  %v80 = vrcp.pop %v78
  %v81 = vmul.f32 %v79, 25.2396
  %v82 = vmul.f32 %v80, 25.2396
  %v83 = vmul.f32 %v81, %v73
  %v84 = vmul.f32 %v82, %v74
  %v85 = vadd.f32 %v62, %v83
  %v86 = vadd.f32 %v63, %v84
  %v87 = vmul.f32 %v85, 0.25
  %v88 = vmul.f32 %v86, 0.25
  %v89 = vadd.f32 %v16, %v87
  %v90 = vadd.f32 %v17, %v88
  %v91 = vmax.f32 %v89, 0.0
  %v92 = vmax.f32 %v90, 0.0
  %v93 = vmin.f32 %v91, 65535.0
  %v94 = vmin.f32 %v92, 65535.0
  %vm95 = vcmask 130048
  %96 = vst.msk [vmem:[%s1] sm:$0xff] %vm95, %v93
  %97 = vst.msk [vmem:[%s1 + $0x8] sm:$0xff] %vm95, %v94
  %100 = vrot.lane.b32.xlu0 %v93, 127
  %v101 = vpop.permute.xlu0 %100
  %102 = vrot.lane.b32.xlu0 %v94, 127
  %v103 = vpop.permute.xlu0 %102
  %106 = vrot.lane.b32.xlu0 %v93, 15
  %v107 = vpop.permute.xlu0 %106
  %108 = vrot.lane.b32.xlu0 %v94, 15
  %v109 = vpop.permute.xlu0 %108
  %vm112 = vcmask 121856
  %v113 = vsel %vm112, %v101, %v107
  %v114 = vsel %vm112, %v103, %v109
  %vm115 = vcmask 1046528
  %v116 = vrot.slane %v93, 1
  %v117 = vrot.slane %v94, 1
  %v118 = vsel %vm115, %v116, %v117
  %v122 = vsel %vm115, %v117, %v116
  %124 = vrot.lane.b32.xlu0 %v118, 127
  %v125 = vpop.permute.xlu0 %124
  %126 = vrot.lane.b32.xlu0 %v122, 127
  %v127 = vpop.permute.xlu0 %126
  %130 = vrot.lane.b32.xlu0 %v118, 15
  %v131 = vpop.permute.xlu0 %130
  %132 = vrot.lane.b32.xlu0 %v122, 15
  %v133 = vpop.permute.xlu0 %132
  %v136 = vsel %vm112, %v125, %v131
  %v137 = vsel %vm112, %v127, %v133
  %v138 = vmul.f32 %v93, 0.0038910506
  %v139 = vmul.f32 %v94, 0.0038910506
  %v140 = vadd.f32 %v113, %v118
  %v141 = vadd.f32 %v114, %v122
  %v142 = vmul.f32 %v140, 0.5
  %v143 = vmul.f32 %v141, 0.5
  %v144 = vmul.f32 %v142, 0.0038910506
  %v145 = vmul.f32 %v143, 0.0038910506
  %v146 = vmul.f32 %v136, 0.0038910506
  %v147 = vmul.f32 %v137, 0.0038910506
  %v148 = vmax.f32 %v138, %v144
  %v149 = vmax.f32 %v139, %v145
  %v150 = vmax.f32 %v148, %v146
  %v151 = vmax.f32 %v149, %v147
  %v152 = vmul.f32 %v150, 0.00390625
  %v153 = vmul.f32 %v151, 0.00390625
  %v154 = vadd.f32 %v152, 1e-20
  %v155 = vadd.f32 %v153, 1e-20
  %v156 = vlog2.pop %v154
  %v157 = vmul.f32 %v156, 0.6931472
  %v158 = vlog2.pop %v155
  %v159 = vmul.f32 %v158, 0.6931472
  %v160 = vlaneseq
  %v161 = vshrl.u32 %v160, 7
  %v162 = vadd.s32 %v161, 8
  %v163 = vlaneseq
  %v164 = vand.u32 %v163, 127
  %v165 = vand.u32 %v161, 1
  %v166 = vand.u32 %v162, 1
  %vm167 = vcmp.eq.s32.totalorder %v165, 0
  %vm168 = vcmp.eq.s32.totalorder %v166, 0
  %v169 = vand.u32 %v164, 1
  %vm170 = vcmp.eq.s32.totalorder %v169, 0
  %vm171 = vmand %vm167, %vm170
  %vm172 = vmand %vm168, %vm170
  %s173 = smul.u32 0, 16
  %v174 = vstv %s173
  %v175 = vadd.s32 %v174, %v161
  %v176 = vadd.s32 %v174, %v162
  %vm177 = vcmp.lt.s32.totalorder %v175, 16
  %vm178 = vcmp.lt.s32.totalorder %v176, 16
  %vm179 = vmand %vm171, %vm177
  %vm180 = vmand %vm172, %vm178
  %v181 = vsel %vm179, %v157, 0.0
  %v182 = vsel %vm180, %v159, 0.0
  %v183 = vsel %vm95, %v181, 0.0
  %184 = vadd.xlane.f32.xlu0 %v183
  %v185 = vpop.xlane.xlu0 %184
  %v186 = vsel %vm95, %v182, 0.0
  %187 = vadd.xlane.f32.xlu0 %v186
  %v188 = vpop.xlane.xlu0 %187
  %vm189 = vcmask 7168
  %190 = vst.msk [vmem:[%s2] sm:$0xff] %vm189, %v185
  %191 = vst.msk [vmem:[%s2 + $0x8] sm:$0xff] %vm189, %v188
  // Predicated region
  $region6: #{llr2v_forward.2} parent=0 // pred_check
    _
  $region7: #{llr2v_forward.2} parent=0 // pred_check_branch
    %193 = sbr.rel (0) target = $region9
  $region8: #{llr2v_forward.2} parent=0 // pred_region
    _
  $region9: #{llr2v_forward.2} parent=0 // pred_fallthru
    _
  // Predicated region
  $region10: #{llr2v_forward.2} parent=0 // pred_check
    _
  $region11: #{llr2v_forward.2} parent=0 // pred_check_branch
    %195 = sbr.rel (0) target = $region13
  $region12: #{llr2v_forward.2} parent=0 // pred_region
    _
  $region13: #{llr2v_forward.2} parent=0 // pred_fallthru
    _
  // Predicated region
  $region14: #{llr2v_forward.2} parent=0 // pred_check
    _
  $region15: #{llr2v_forward.2} parent=0 // pred_check_branch
    %197 = sbr.rel (0) target = $region17
  $region16: #{llr2v_forward.2} parent=0 // pred_region
    _
  $region17: #{llr2v_forward.2} parent=0 // pred_fallthru
    _
  // Predicated region
  $region18: #{llr2v_forward.2} parent=0 // pred_check
    _
  $region19: #{llr2v_forward.2} parent=0 // pred_check_branch
    %199 = sbr.rel (0) target = $region21
  $region20: #{llr2v_forward.2} parent=0 // pred_region
    _
  $region21: #{llr2v_forward.2} parent=0 // pred_fallthru
    _

</llo_original>
